<compile_context>
chip_gen: v5e
topology: v5e:2x2
jax: 0.10.0
libtpu: 0.0.40
codegen_flags: <defaults>
</compile_context>

<pallas_src>
import jax
import jax.numpy as jnp
from jax import lax
from jax.experimental import pallas as pl
from jax.experimental.pallas import tpu as pltpu


# ---------------------------------------------------------------------------
# Single-step cell: one gridless pallas_call, everything in VMEM.
#   x: (B, D), h: (B, H), wxt: (D, H), wht: (H, H), b: (1, H) -> o: (B, H)
# ---------------------------------------------------------------------------
def rnn_cell_kernel(x_ref, h_ref, wxt_ref, wht_ref, b_ref, o_ref):
    acc = jnp.dot(x_ref[...], wxt_ref[...], preferred_element_type=jnp.float32)
    acc = acc + jnp.dot(h_ref[...], wht_ref[...],
                        preferred_element_type=jnp.float32)
    o_ref[...] = jnp.maximum(acc + b_ref[...], 0.0).astype(o_ref.dtype)


def rnn_cell(x, h, w_x, w_h, bias):
    """x: (B, D), h: (B, H), w_x: (H, D), w_h: (H, H) (torch layout), bias: (1, H)."""
    B, _ = x.shape
    H = h.shape[-1]
    vmem = pl.BlockSpec(memory_space=pltpu.MemorySpace.VMEM)
    return pl.pallas_call(
        rnn_cell_kernel,
        out_shape=jax.ShapeDtypeStruct((B, H), x.dtype),
        in_specs=[vmem, vmem, vmem, vmem, vmem],
        out_specs=vmem,
    )(x, h, w_x.T, w_h.T, bias)   # one-time (K, N) transpose, done by XLA


# ---------------------------------------------------------------------------
# Fused recurrence: T cell applications inside ONE grid step per batch tile.
#   grid = (B // TB,).  Prologue projects all timesteps' x in one matmul,
#   then an unrolled fori_loop runs the serial h-recurrence.
# ---------------------------------------------------------------------------
def rnn_seq_kernel(xs_ref, h0_ref, wxt_ref, wht_ref, b_ref, hs_ref,
                   xp_ref, h_ref):
    T, TB, D = xs_ref.shape

    # Prologue (outside the serial chain): xp[t*TB:(t+1)*TB] = x_t @ Wx^T + b
    # for ALL timesteps as a single (T*TB, D) x (D, H) MXU matmul.
    x_all = xs_ref[...].reshape(T * TB, D)
    xp_ref[...] = jnp.dot(x_all, wxt_ref[...],
                          preferred_element_type=jnp.float32) + b_ref[...]

    # Serial recurrence, hidden state carried in f32 VMEM scratch.
    h_ref[...] = h0_ref[...].astype(jnp.float32)

    def step(t, carry):
        off = pl.multiple_of(t * TB, TB)
        pre = xp_ref[pl.ds(off, TB), :] + jnp.dot(
            h_ref[...], wht_ref[...], preferred_element_type=jnp.float32)
        h_new = jnp.maximum(pre, 0.0)
        h_ref[...] = h_new                       # carry to next timestep
        hs_ref[t] = h_new.astype(hs_ref.dtype)   # lane-dense (TB, H) store
        return carry

    lax.fori_loop(0, T, step, 0, unroll=True)


def rnn_seq(xs, h0, w_x, w_h, bias, *, batch_tile=None):
    """xs: (T, B, D), h0: (B, H) -> hs: (T, B, H) (hidden state per timestep).

    w_x: (H, D), w_h: (H, H) in torch nn.Linear layout; transposed once here.
    """
    T, B, D = xs.shape
    H = h0.shape[-1]
    TB = batch_tile or B
    assert B % TB == 0 and TB % 8 == 0, \
        "batch tile must divide B and be a multiple of 8 (f32 sublanes)"

    return pl.pallas_call(
        rnn_seq_kernel,
        out_shape=jax.ShapeDtypeStruct((T, B, H), xs.dtype),
        grid=(B // TB,),
        in_specs=[
            pl.BlockSpec((T, TB, D), lambda b: (0, b, 0)),  # whole xs tile
            pl.BlockSpec((TB, H), lambda b: (b, 0)),        # h0 per batch tile
            pl.BlockSpec((D, H), lambda b: (0, 0)),         # resident Wx^T
            pl.BlockSpec((H, H), lambda b: (0, 0)),         # resident Wh^T
            pl.BlockSpec((1, H), lambda b: (0, 0)),         # resident bias
        ],
        out_specs=pl.BlockSpec((T, TB, H), lambda b: (0, b, 0)),
        scratch_shapes=[
            pltpu.VMEM((T * TB, H), jnp.float32),  # precomputed x-projection
            pltpu.VMEM((TB, H), jnp.float32),      # carried hidden state
        ],
        compiler_params=pltpu.CompilerParams(
            dimension_semantics=("parallel",)),
    )(xs, h0, w_x.T, w_h.T, bias)


# ---------------------------------------------------------------------------
# Pure-JAX references (identical math to the torch module).
# ---------------------------------------------------------------------------
def rnn_cell_ref(x, h, w_x, w_h, bias):
    return jnp.maximum(x @ w_x.T + h @ w_h.T + bias, 0.0)


def rnn_seq_ref(xs, h0, w_x, w_h, bias):
    h = h0
    hs = []
    for t in range(xs.shape[0]):
        h = rnn_cell_ref(xs[t], h, w_x, w_h, bias)
        hs.append(h)
    return jnp.stack(hs, axis=0)


if __name__ == "__main__":
    B, D, H, T = 8, 16, 128, 8   # batch, input_dim, latent_dim (lane-dense), seq

    key = jax.random.PRNGKey(0)
    kx, kh, kxs, kwx, kwh, kb = jax.random.split(key, 6)

    # nn.Linear(D + H, H) default init: U(-1/sqrt(fan_in), 1/sqrt(fan_in)),
    # with the weight stored split as the x-slab and h-slab of W = [Wx | Wh].
    fan_in = D + H
    bound = 1.0 / (fan_in ** 0.5)
    w_x = jax.random.uniform(kwx, (H, D), minval=-bound, maxval=bound, dtype=jnp.float32)
    w_h = jax.random.uniform(kwh, (H, H), minval=-bound, maxval=bound, dtype=jnp.float32)
    bias = jax.random.uniform(kb, (1, H), minval=-bound, maxval=bound, dtype=jnp.float32)

    x = jax.random.normal(kx, (B, D), dtype=jnp.float32)
    h = jax.random.normal(kh, (B, H), dtype=jnp.float32)

    # --- single cell step (the module's forward) ---
    out = jax.block_until_ready(rnn_cell(x, h, w_x, w_h, bias))
    ref = rnn_cell_ref(x, h, w_x, w_h, bias)
    assert out.shape == (B, H)
    assert jnp.allclose(out, ref, atol=1e-5, rtol=1e-5), "cell mismatch vs reference"

    # --- fused T-step recurrence (cell applied per timestep, one pallas_call) ---
    xs = jax.random.normal(kxs, (T, B, D), dtype=jnp.float32)
    hs = jax.block_until_ready(rnn_seq(xs, h, w_x, w_h, bias))
    hs_ref = rnn_seq_ref(xs, h, w_x, w_h, bias)
    assert hs.shape == (T, B, H)
    assert jnp.allclose(hs, hs_ref, atol=1e-4, rtol=1e-4), "sequence mismatch vs reference"

    print("KERNEL_OK")
</pallas_src>

<mosaic_0001>
module attributes {stable_mosaic.version = 11 : i64} {
  func.func @rnn_cell_kernel(%arg0: memref<8x16xf32, #tpu.memory_space<vmem>>, %arg1: memref<8x128xf32, #tpu.memory_space<vmem>>, %arg2: memref<16x128xf32, #tpu.memory_space<vmem>>, %arg3: memref<128x128xf32, #tpu.memory_space<vmem>>, %arg4: memref<1x128xf32, #tpu.memory_space<vmem>>, %arg5: memref<8x128xf32, #tpu.memory_space<vmem>>) attributes {dimension_semantics = [], scalar_prefetch = 0 : i64, scratch_operands = 0 : i64, tpu.core_type = #tpu.core_type<tc>} {
    %c0 = arith.constant 0 : index
    %c0_0 = arith.constant 0 : index
    %0 = vector.load %arg0[%c0, %c0_0] : memref<8x16xf32, #tpu.memory_space<vmem>>, vector<8x16xf32>
    %c0_1 = arith.constant 0 : index
    %c0_2 = arith.constant 0 : index
    %1 = vector.load %arg2[%c0_1, %c0_2] : memref<16x128xf32, #tpu.memory_space<vmem>>, vector<16x128xf32>
    %cst = arith.constant dense<0.000000e+00> : vector<8x128xf32>
    %2 = tpu.matmul %0, %1, %cst {dimension_numbers = #tpu.dot_dimension_numbers<[1], [0], [0], [1], [0, 0, 1, 1], [], []>} : vector<8x16xf32>, vector<16x128xf32>, vector<8x128xf32> -> vector<8x128xf32>
    %c0_3 = arith.constant 0 : index
    %c0_4 = arith.constant 0 : index
    %3 = vector.load %arg1[%c0_3, %c0_4] : memref<8x128xf32, #tpu.memory_space<vmem>>, vector<8x128xf32>
    %c0_5 = arith.constant 0 : index
    %c0_6 = arith.constant 0 : index
    %4 = vector.load %arg3[%c0_5, %c0_6] : memref<128x128xf32, #tpu.memory_space<vmem>>, vector<128x128xf32>
    %cst_7 = arith.constant dense<0.000000e+00> : vector<8x128xf32>
    %5 = tpu.matmul %3, %4, %cst_7 {dimension_numbers = #tpu.dot_dimension_numbers<[1], [0], [0], [1], [0, 0, 1, 1], [], []>} : vector<8x128xf32>, vector<128x128xf32>, vector<8x128xf32> -> vector<8x128xf32>
    %6 = arith.addf %2, %5 : vector<8x128xf32>
    %c0_8 = arith.constant 0 : index
    %c0_9 = arith.constant 0 : index
    %7 = vector.load %arg4[%c0_8, %c0_9] : memref<1x128xf32, #tpu.memory_space<vmem>>, vector<1x128xf32>
    %8 = vector.broadcast %7 : vector<1x128xf32> to vector<8x128xf32>
    %9 = arith.addf %6, %8 : vector<8x128xf32>
    %cst_10 = arith.constant 0.000000e+00 : f32
    %10 = vector.broadcast %cst_10 : f32 to vector<8x128xf32>
    %11 = arith.maximumf %9, %10 : vector<8x128xf32>
    %c0_11 = arith.constant 0 : index
    %c0_12 = arith.constant 0 : index
    %12 = vector.load %arg5[%c0_11, %c0_12] : memref<8x128xf32, #tpu.memory_space<vmem>>, vector<8x128xf32>
    tpu.vector_store %arg5[%c0_11, %c0_12], %11 {strides = array<i32>} : memref<8x128xf32, #tpu.memory_space<vmem>>, vector<8x128xf32>,
    return
  }
}

</mosaic_0001>

<llo_original>
// kernel: tpu_custom_call.1
$region0: #{tpu_custom_call.1}
  #allocation0 [shape = 'u32[]', space=smem, size = 0x4, offset = 0x4, fixed_abs, tag = 'smem constant byte address 0x4 - core index']
  #allocation1 [shape = 'u32[72,128]{1,0:T(1,128)}', space=vmem, size = 0x9000, scoped, tag = 'internal scratch']
  %s0 = inlined_call_operand.hbm [shape: f32[8,16], index: 0, kind: input, shape index: {}]
  %s1 = inlined_call_operand.hbm [shape: f32[8,128], index: 1, kind: input, shape index: {}]
  %s2 = inlined_call_operand.hbm [shape: f32[16,128], index: 2, kind: input, shape index: {}]
  %s3 = inlined_call_operand.hbm [shape: f32[128,128], index: 3, kind: input, shape index: {}]
  %s4 = inlined_call_operand.vmem [shape: f32[1,128], index: 4, kind: input, shape index: {}]
  %s5 = inlined_call_operand.hbm [shape: f32[8,128], index: 5, kind: output, shape index: {}]
  %s6 = sld [smem:[#allocation0]]
  $region46: #{tpu_custom_call.1} parent=0
    _
  %s8 = ssub.s32 1, %s6
  %s9 = scalar_select 0, %s8, %s6
  $region1: #{tpu_custom_call.1} parent=0
    #allocation2 [shape = 'u8[4096]{0}', space=vmem, size = 0x1000, scoped, tag = 'input window, operand 0, single buffered']
    #allocation3 [shape = 's32[1]{0}', space=sflag, size = 0x4, scoped, tag = 'scoped memory for tpu_custom_call.1']
    #allocation4 [shape = 's32[1]{0}', space=sflag, size = 0x4, scoped, tag = 'scoped memory for tpu_custom_call.1']
    #allocation5 [shape = 'u8[4096]{0}', space=vmem, size = 0x1000, scoped, tag = 'input window, operand 1, single buffered']
    #allocation6 [shape = 's32[1]{0}', space=sflag, size = 0x4, scoped, tag = 'scoped memory for tpu_custom_call.1']
    #allocation7 [shape = 'u8[8192]{0}', space=vmem, size = 0x2000, scoped, tag = 'input window, operand 2, single buffered']
    #allocation8 [shape = 'u8[65536]{0}', space=vmem, size = 0x10000, scoped, tag = 'input window, operand 3, single buffered']
    #allocation9 [shape = 's32[1]{0}', space=sflag, size = 0x4, scoped, tag = 'scoped memory for tpu_custom_call.1']
    #allocation10 [shape = 'u8[4096]{0}', space=vmem, size = 0x1000, scoped, tag = 'output window, operand 0, single buffered']
    %10 = vsyncpa [#allocation3], 0
    %11 = vsyncpa [#allocation6], 0
    %12 = vsyncpa [#allocation9], 0
    %13 = vsyncpa [#allocation4], 0
    // Predicated region
    $region2: #{tpu_custom_call.1} parent=1 // pred_check
      _
    $region3: #{tpu_custom_call.1} parent=1 // pred_check_branch
      %15 = sbr.rel (0) target = $region5
    $region4: #{tpu_custom_call.1} parent=1 // pred_region
      %17 = vsyncadd [#allocation3], 0
      %s19 = sshll.u32 %s0, 4
      %s20 = int_to_ptr.hbm [resolvable:$true] %s19
      %s21 = sshll.u32 [#allocation2], 4
      %s22 = int_to_ptr.vmem [resolvable:$true] %s21
      %24 = dma.hbm_to_vmem [thread:$0]  %s20, 128, %s22, [#allocation3]
    $region5: #{tpu_custom_call.1} parent=1 // pred_fallthru
      _
    // Predicated region
    $region6: #{tpu_custom_call.1} parent=1 // pred_check
      _
    $region7: #{tpu_custom_call.1} parent=1 // pred_check_branch
      %26 = sbr.rel (0) target = $region9
    $region8: #{tpu_custom_call.1} parent=1 // pred_region
      %28 = vsyncadd [#allocation6], 0
      %s30 = sshll.u32 %s1, 4
      %s31 = int_to_ptr.hbm [resolvable:$true] %s30
      %s32 = sshll.u32 [#allocation5], 4
      %s33 = int_to_ptr.vmem [resolvable:$true] %s32
      %35 = dma.hbm_to_vmem [thread:$0]  %s31, 128, %s33, [#allocation6]
    $region9: #{tpu_custom_call.1} parent=1 // pred_fallthru
      _
    // Predicated region
    $region10: #{tpu_custom_call.1} parent=1 // pred_check
      _
    $region11: #{tpu_custom_call.1} parent=1 // pred_check_branch
      %37 = sbr.rel (0) target = $region13
    $region12: #{tpu_custom_call.1} parent=1 // pred_region
      %39 = vsyncadd [#allocation6], 0
      %s40 = sshll.u32 %s2, 4
      %s41 = int_to_ptr.hbm [resolvable:$true] %s40
      %s42 = sshll.u32 [#allocation7], 4
      %s43 = int_to_ptr.vmem [resolvable:$true] %s42
      %48 = dma.hbm_to_vmem [thread:$0]  %s41, 256, %s43, [#allocation6], 128, 128, 8
    $region13: #{tpu_custom_call.1} parent=1 // pred_fallthru
      _
    // Predicated region
    $region14: #{tpu_custom_call.1} parent=1 // pred_check
      _
    $region15: #{tpu_custom_call.1} parent=1 // pred_check_branch
      %50 = sbr.rel (0) target = $region17
    $region16: #{tpu_custom_call.1} parent=1 // pred_region
      %52 = vsyncadd [#allocation9], 0
      %s53 = sshll.u32 %s3, 4
      %s54 = int_to_ptr.hbm [resolvable:$true] %s53
      %s55 = sshll.u32 [#allocation8], 4
      %s56 = int_to_ptr.vmem [resolvable:$true] %s55
      %61 = dma.hbm_to_vmem [thread:$0]  %s54, 2048, %s56, [#allocation9], 128, 128, 8
    $region17: #{tpu_custom_call.1} parent=1 // pred_fallthru
      _
    // Predicated region
    $region18: #{tpu_custom_call.1} parent=1 // pred_check
      _
    $region19: #{tpu_custom_call.1} parent=1 // pred_check_branch
      %63 = sbr.rel (0) target = $region21
    $region20: #{tpu_custom_call.1} parent=1 // pred_region
      _
    $region21: #{tpu_custom_call.1} parent=1 // pred_fallthru
      _
    // Predicated region
    $region22: #{tpu_custom_call.1} parent=1 // pred_check
      _
    $region23: #{tpu_custom_call.1} parent=1 // pred_check_branch
      %65 = sbr.rel (0) target = $region25
    $region24: #{tpu_custom_call.1} parent=1 // pred_region
      %67 = dma.done [#allocation3], 128
    $region25: #{tpu_custom_call.1} parent=1 // pred_fallthru
      _
    // Predicated region
    $region26: #{tpu_custom_call.1} parent=1 // pred_check
      _
    $region27: #{tpu_custom_call.1} parent=1 // pred_check_branch
      %69 = sbr.rel (0) target = $region29
    $region28: #{tpu_custom_call.1} parent=1 // pred_region
      %71 = dma.done [#allocation6], 128
    $region29: #{tpu_custom_call.1} parent=1 // pred_fallthru
      _
    // Predicated region
    $region30: #{tpu_custom_call.1} parent=1 // pred_check
      _
    $region31: #{tpu_custom_call.1} parent=1 // pred_check_branch
      %73 = sbr.rel (0) target = $region33
    $region32: #{tpu_custom_call.1} parent=1 // pred_region
      %75 = dma.done [#allocation6], 256
    $region33: #{tpu_custom_call.1} parent=1 // pred_fallthru
      _
    // Predicated region
    $region34: #{tpu_custom_call.1} parent=1 // pred_check
      _
    $region35: #{tpu_custom_call.1} parent=1 // pred_check_branch
      %77 = sbr.rel (0) target = $region37
    $region36: #{tpu_custom_call.1} parent=1 // pred_region
      %79 = dma.done [#allocation9], 2048
    $region37: #{tpu_custom_call.1} parent=1 // pred_fallthru
      _
    %v80 = vld [vmem:[#allocation2] sm:$0xff]
    %v81 = vld [vmem:[#allocation7] sm:$0xff]
    %v82 = vld [vmem:[#allocation7 + $0x8] sm:$0xff]
    %v83 = vld [vmem:[#allocation5] sm:$0xff]
    %v84 = vld [vmem:[#allocation8] sm:$0xff]
    %v85 = vld [vmem:[#allocation8 + $0x8] sm:$0xff]
    %v86 = vld [vmem:[#allocation8 + $0x10] sm:$0xff]
    %v87 = vld [vmem:[#allocation8 + $0x18] sm:$0xff]
    %v88 = vld [vmem:[#allocation8 + $0x20] sm:$0xff]
    %v89 = vld [vmem:[#allocation8 + $0x28] sm:$0xff]
    %v90 = vld [vmem:[#allocation8 + $0x30] sm:$0xff]
    %v91 = vld [vmem:[#allocation8 + $0x38] sm:$0xff]
    %v92 = vld [vmem:[#allocation8 + $0x40] sm:$0xff]
    %v93 = vld [vmem:[#allocation8 + $0x48] sm:$0xff]
    %v94 = vld [vmem:[#allocation8 + $0x50] sm:$0xff]
    %v95 = vld [vmem:[#allocation8 + $0x58] sm:$0xff]
    %v96 = vld [vmem:[#allocation8 + $0x60] sm:$0xff]
    %v97 = vld [vmem:[#allocation8 + $0x68] sm:$0xff]
    %v98 = vld [vmem:[#allocation8 + $0x70] sm:$0xff]
    %v99 = vld [vmem:[#allocation8 + $0x78] sm:$0xff]
    %100 = vmatpush.msra.mxu0 %v99
    %101 = vmatpush.msra.mxu0 %v98
    %102 = vmatpush.msra.mxu0 %v97
    %103 = vmatpush.msra.mxu0 %v96
    %104 = vmatpush.msra.mxu0 %v95
    %105 = vmatpush.msra.mxu0 %v94
    %106 = vmatpush.msra.mxu0 %v93
    %107 = vmatpush.msra.mxu0 %v92
    %108 = vmatpush.msra.mxu0 %v91
    %109 = vmatpush.msra.mxu0 %v90
    %110 = vmatpush.msra.mxu0 %v89
    %111 = vmatpush.msra.mxu0 %v88
    %112 = vmatpush.msra.mxu0 %v87
    %113 = vmatpush.msra.mxu0 %v86
    %114 = vmatpush.msra.mxu0 %v85
    %115 = vmatpush.msra.mxu0 %v84
    %116 = vmatmul.f32.gmra.mxu0 %v83
    %v117 = vpop.f32.mrf.mxu0
    %v118 = vadd.f32 0.0, %v117
    %119 = vdwg.mxu0
    %vm120 = vcmask 130048
    %v122 = vsel %vm120, %v80, 0
    %124 = vmatpush.msra.mxu0 0.0
    %125 = vmatpush.msra.mxu0 0.0
    %126 = vmatpush.msra.mxu0 0.0
    %127 = vmatpush.msra.mxu0 0.0
    %128 = vmatpush.msra.mxu0 0.0
    %129 = vmatpush.msra.mxu0 0.0
    %130 = vmatpush.msra.mxu0 0.0
    %131 = vmatpush.msra.mxu0 0.0
    %132 = vmatpush.msra.mxu0 0.0
    %133 = vmatpush.msra.mxu0 0.0
    %134 = vmatpush.msra.mxu0 0.0
    %135 = vmatpush.msra.mxu0 0.0
    %136 = vmatpush.msra.mxu0 0.0
    %137 = vmatpush.msra.mxu0 0.0
    %138 = vmatpush.msra.mxu0 %v82
    %139 = vmatpush.msra.mxu0 %v81
    %140 = vmatmul.f32.gmra.mxu0 %v122
    %v141 = vpop.f32.mrf.mxu0
    %v142 = vadd.f32 %v118, %v141
    %143 = vdwg.mxu0
    %v144 = vld [vmem:[%s4] sm:$0x1]
    %v146 = vperm.slane %v144, 0
    %v148 = vadd.f32 %v142, %v146
    %v149 = vmax.f32 %v148, 0.0
    %150 = vst [vmem:[#allocation10] sm:$0xff] %v149
    // Predicated region
    $region38: #{tpu_custom_call.1} parent=1 // pred_check
      _
    $region39: #{tpu_custom_call.1} parent=1 // pred_check_branch
      %152 = sbr.rel (0) target = $region41
    $region40: #{tpu_custom_call.1} parent=1 // pred_region
      %154 = vsyncadd [#allocation4], 0
      %s156 = sshll.u32 [#allocation10], 4
      %s157 = int_to_ptr.vmem [resolvable:$true] %s156
      %s158 = sshll.u32 %s5, 4
      %s159 = int_to_ptr.hbm [resolvable:$true] %s158
      %161 = dma.vmem_to_hbm [thread:$0]  %s157, 128, %s159, [#allocation4]
    $region41: #{tpu_custom_call.1} parent=1 // pred_fallthru
      _
    // Predicated region
    $region42: #{tpu_custom_call.1} parent=1 // pred_check
      _
    $region43: #{tpu_custom_call.1} parent=1 // pred_check_branch
      %163 = sbr.rel (0) target = $region45
    $region44: #{tpu_custom_call.1} parent=1 // pred_region
      %165 = dma.done [#allocation4], 128
    $region45: #{tpu_custom_call.1} parent=1 // pred_fallthru
      _
    %166 = vsyncpa [#allocation3], 1
    %167 = vsyncpa [#allocation6], 1
    %168 = vsyncpa [#allocation9], 1
    %169 = vsyncpa [#allocation4], 1

</llo_original>
